<compile_context>
chip_gen: v7x
topology: tpu7x:2x2x1
jax: 0.10.0
libtpu: 0.0.40
codegen_flags: <defaults>
</compile_context>

<pallas_src>
import functools

import jax
import jax.numpy as jnp
from jax.experimental import pallas as pl
from jax.experimental.pallas import tpu as pltpu


# ----------------------------------------------------------------------------
# Helpers
# ----------------------------------------------------------------------------
def _round_up(x: int, m: int) -> int:
    return ((x + m - 1) // m) * m


def _vmem_capacity_bytes() -> int:
    """Per-core VMEM capacity; fall back to the v7x floor (safe everywhere)."""
    try:
        info = pltpu.get_tpu_info()
        cap = getattr(info, "vmem_capacity_bytes", None)
        if cap:
            return int(cap)
    except Exception:  # pragma: no cover - CPU / old runtime fallback
        pass
    return 64 * 1024 * 1024


def _aligned_divisors(padded: int, align: int):
    """All multiples of `align` that divide `padded`, descending."""
    q = padded // align
    return sorted({d * align for d in range(1, q + 1) if q % d == 0}, reverse=True)


def _tile_bytes(tm: int, tk: int, tn: int, in_isz: int, out_isz: int) -> int:
    x_buf = 2 * tm * tk * in_isz      # double-buffered activation tile
    w_buf = 2 * tk * tn * in_isz      # double-buffered weight tile
    o_buf = 2 * tm * tn * out_isz     # double-buffered output tile
    acc = tm * tn * 4                 # f32 accumulator scratch
    bias = 2 * 1 * tn * 4
    return x_buf + w_buf + o_buf + acc + bias


def _select_tiles(M_pad, K_pad, N_pad, in_isz, out_isz, budget):
    m_divs = _aligned_divisors(M_pad, 8)
    n_divs = _aligned_divisors(N_pad, 128)
    k_divs = _aligned_divisors(K_pad, 128)

    def fits(tm, tk, tn):
        return _tile_bytes(tm, tk, tn, in_isz, out_isz) <= budget

    # 1) M tile: whole padded batch when it fits -> weight streams from HBM
    #    exactly once; otherwise the largest aligned divisor that fits.
    tm = next((t for t in m_divs if t <= 1024 and fits(t, 128, 128)), m_divs[-1])
    # 2) N tile: lane-dense, as large as the budget allows (cap 512).
    tn = next((t for t in n_divs if t <= 512 and fits(tm, 128, t)), n_divs[-1])
    # 3) K tile: grow first -- amortizes the per-step accumulator RMW and the
    #    ~0.35us grid-step overhead over more MXU work (cap 2048).
    tk = next((t for t in k_divs if t <= 2048 and fits(tm, t, tn)), k_divs[-1])

    # v7x has 2 TensorCores: keep >= 2 blocks along a parallel axis so the
    # "parallel" semantics actually distribute work.  Prefer splitting N.
    if (M_pad // tm) == 1 and (N_pad // tn) == 1:
        smaller_n = [t for t in n_divs if t < tn]
        if smaller_n:
            tn = smaller_n[0]

    return tm, tk, tn


# ----------------------------------------------------------------------------
# Kernel
# ----------------------------------------------------------------------------
def _fc_kernel(x_ref, w_ref, b_ref, o_ref, acc_ref):
    """One (tm, tn) output tile, reduced over the K grid axis (last axis)."""
    k = pl.program_id(2)

    @pl.when(k == 0)
    def _init():
        acc_ref[...] = jnp.zeros_like(acc_ref)

    acc_ref[...] += jnp.dot(
        x_ref[...], w_ref[...], preferred_element_type=jnp.float32
    )

    @pl.when(k == pl.num_programs(2) - 1)
    def _finalize():
        # Bias added once, in f32, then cast + lane-dense store.
        o_ref[...] = (acc_ref[...] + b_ref[...].astype(jnp.float32)).astype(
            o_ref.dtype
        )


# ----------------------------------------------------------------------------
# One-time parameter preprocessing (do at load time, NOT per forward call).
# ----------------------------------------------------------------------------
def prepare_fc_params(w, b, compute_dtype=jnp.bfloat16):
    """Transpose W to (in_dim, out_dim), zero-pad K/N to multiples of 128 and
    cast the MXU operand dtype.  Bias stays f32 (it is added in f32)."""
    out_dim, in_dim = w.shape
    K_pad = _round_up(in_dim, 128)
    N_pad = _round_up(out_dim, 128)

    w_t = jnp.pad(w.T, ((0, K_pad - in_dim), (0, N_pad - out_dim)))
    if compute_dtype is not None:
        w_t = w_t.astype(compute_dtype)
    b_p = jnp.pad(b.reshape(1, out_dim), ((0, 0), (0, N_pad - out_dim)))
    b_p = b_p.astype(jnp.float32)
    return w_t, b_p


# ----------------------------------------------------------------------------
# Forward
# ----------------------------------------------------------------------------
@functools.partial(jax.jit, static_argnames=("out_dim", "xla_fast_path"))
def fc_block_forward(x, w_prepped, b_prepped, *, out_dim, xla_fast_path=False):
    """nn.Linear forward: y = x @ W^T + b.

    x:          (B, in_dim)      activations (any float dtype)
    w_prepped:  (K_pad, N_pad)   from prepare_fc_params (pre-transposed/padded)
    b_prepped:  (1, N_pad)       f32 bias from prepare_fc_params
    Returns (B, out_dim) in x.dtype.
    """
    B, in_dim = x.shape
    K_pad, N_pad = w_prepped.shape
    assert in_dim <= K_pad, "activation in_dim larger than prepared weight"
    out_dtype = x.dtype

    compute_dtype = w_prepped.dtype
    x_c = x.astype(compute_dtype)

    M_pad = _round_up(B, 8)
    x_p = jnp.pad(x_c, ((0, M_pad - B), (0, K_pad - in_dim)))

    in_isz = jnp.dtype(compute_dtype).itemsize
    out_isz = jnp.dtype(out_dtype).itemsize

    vmem_cap = _vmem_capacity_bytes()
    tile_budget = int(0.70 * vmem_cap)           # headroom for compiler scratch
    vmem_limit = int(0.85 * vmem_cap)

    tm, tk, tn = _select_tiles(M_pad, K_pad, N_pad, in_isz, out_isz, tile_budget)
    grid = (M_pad // tm, N_pad // tn, K_pad // tk)

    # Tiny-shape fast path: a single XLA fusion beats kernel + padding
    # overhead when the whole padded problem is one tile.  Opt-in so callers
    # (and the self-test) can force the Pallas path.
    if xla_fast_path and grid == (1, 1, 1):
        y = jnp.dot(x_c, w_prepped[:in_dim, :out_dim].astype(compute_dtype),
                    preferred_element_type=jnp.float32)
        y = y + b_prepped[0, :out_dim]
        return y.astype(out_dtype)

    cost = pl.CostEstimate(
        flops=2 * M_pad * K_pad * N_pad,
        transcendentals=0,
        bytes_accessed=(x_p.size * in_isz + w_prepped.size * in_isz
                        + b_prepped.size * 4 + M_pad * N_pad * out_isz),
    )

    out_p = pl.pallas_call(
        _fc_kernel,
        out_shape=jax.ShapeDtypeStruct((M_pad, N_pad), out_dtype),
        grid_spec=pltpu.PrefetchScalarGridSpec(
            num_scalar_prefetch=0,
            grid=grid,
            in_specs=[
                pl.BlockSpec((tm, tk), lambda i, j, k: (i, k)),   # x tile
                pl.BlockSpec((tk, tn), lambda i, j, k: (k, j)),   # W^T tile
                pl.BlockSpec((1, tn), lambda i, j, k: (0, j)),    # bias tile
            ],
            out_specs=pl.BlockSpec((tm, tn), lambda i, j, k: (i, j)),
            scratch_shapes=[pltpu.VMEM((tm, tn), jnp.float32)],
        ),
        compiler_params=pltpu.CompilerParams(
            # M/N parallel (sharded across v7x's 2 TCs), K is the reduction.
            dimension_semantics=("parallel", "parallel", "arbitrary"),
            vmem_limit_bytes=vmem_limit,
        ),
        cost_estimate=cost,
    )(x_p, w_prepped, b_prepped)

    return out_p[:B, :out_dim]


# ----------------------------------------------------------------------------
# Self-test
# ----------------------------------------------------------------------------
if __name__ == "__main__":
    # Small shapes consistent with the module: batch=8, in_dim=32, out_dim=16.
    B, in_dim, out_dim = 8, 32, 16

    key = jax.random.PRNGKey(0)
    kx, kw, kb = jax.random.split(key, 3)

    x = jax.random.normal(kx, (B, in_dim), dtype=jnp.float32)

    # Deterministic params mimicking nn.Linear's uniform(-1/sqrt(in), 1/sqrt(in)).
    bound = 1.0 / (in_dim ** 0.5)
    w = jax.random.uniform(
        kw, (out_dim, in_dim), minval=-bound, maxval=bound, dtype=jnp.float32
    )
    b = jax.random.uniform(
        kb, (out_dim,), minval=-bound, maxval=bound, dtype=jnp.float32
    )

    # Pure-JAX reference (same math as nn.Linear forward).
    y_ref = x @ w.T + b

    # --- f32 MXU operands: exact path, tight tolerance ----------------------
    w_f32, b_f32 = prepare_fc_params(w, b, compute_dtype=jnp.float32)
    y_f32 = fc_block_forward(x, w_f32, b_f32, out_dim=out_dim)
    y_f32 = jax.block_until_ready(y_f32)
    assert y_f32.shape == (B, out_dim)
    assert jnp.allclose(y_f32, y_ref, atol=1e-5, rtol=1e-5)

    # --- bf16 MXU operands (default): f32 accumulation, loose tolerance -----
    w_bf16, b_bf16 = prepare_fc_params(w, b)  # default compute_dtype=bf16
    y_bf16 = fc_block_forward(x, w_bf16, b_bf16, out_dim=out_dim)
    y_bf16 = jax.block_until_ready(y_bf16)
    assert y_bf16.shape == (B, out_dim)
    assert jnp.allclose(y_bf16, y_ref, atol=5e-2, rtol=5e-2)

    print("KERNEL_OK")
</pallas_src>

<mosaic_0001>
module attributes {stable_mosaic.version = 11 : i64} {
  func.func @_fc_kernel(%arg0: i32, %arg1: i32, %arg2: i32, %arg3: memref<8x128xf32, #tpu.memory_space<vmem>>, %arg4: memref<128x128xf32, #tpu.memory_space<vmem>>, %arg5: memref<1x128xf32, #tpu.memory_space<vmem>>, %arg6: memref<8x128xf32, #tpu.memory_space<vmem>>, %arg7: memref<8x128xf32, #tpu.memory_space<vmem>>) attributes {dimension_semantics = [#tpu.dimension_semantics<parallel>, #tpu.dimension_semantics<parallel>, #tpu.dimension_semantics<arbitrary>], iteration_bounds = array<i64: 1, 1, 1>, scalar_prefetch = 0 : i64, scratch_operands = 1 : i64, tpu.core_type = #tpu.core_type<tc>, window_params = [{transform_indices = @transform_0, window_bounds = array<i64: 8, 128>}, {transform_indices = @transform_1, window_bounds = array<i64: 128, 128>}, {transform_indices = @transform_2, window_bounds = array<i64: 1, 128>}, {transform_indices = @transform_3, window_bounds = array<i64: 8, 128>}]} {
    %c0_i32 = arith.constant 0 : i32
    %0 = arith.cmpi eq, %arg2, %c0_i32 : i32
    %1 = arith.extui %0 : i1 to i32
    %c0_i32_0 = arith.constant 0 : i32
    %2 = arith.cmpi ne, %1, %c0_i32_0 : i32
    scf.if %2 {
      %cst_10 = arith.constant 0.000000e+00 : f32
      %12 = vector.broadcast %cst_10 : f32 to vector<8x128xf32>
      %c0_11 = arith.constant 0 : index
      %c0_12 = arith.constant 0 : index
      %13 = vector.load %arg7[%c0_11, %c0_12] : memref<8x128xf32, #tpu.memory_space<vmem>>, vector<8x128xf32>
      tpu.vector_store %arg7[%c0_11, %c0_12], %12 {strides = array<i32>} : memref<8x128xf32, #tpu.memory_space<vmem>>, vector<8x128xf32>,
    } else {
    }
    %c0 = arith.constant 0 : index
    %c0_1 = arith.constant 0 : index
    %3 = vector.load %arg7[%c0, %c0_1] : memref<8x128xf32, #tpu.memory_space<vmem>>, vector<8x128xf32>
    %c0_2 = arith.constant 0 : index
    %c0_3 = arith.constant 0 : index
    %4 = vector.load %arg3[%c0_2, %c0_3] : memref<8x128xf32, #tpu.memory_space<vmem>>, vector<8x128xf32>
    %c0_4 = arith.constant 0 : index
    %c0_5 = arith.constant 0 : index
    %5 = vector.load %arg4[%c0_4, %c0_5] : memref<128x128xf32, #tpu.memory_space<vmem>>, vector<128x128xf32>
    %cst = arith.constant dense<0.000000e+00> : vector<8x128xf32>
    %6 = tpu.matmul %4, %5, %cst {dimension_numbers = #tpu.dot_dimension_numbers<[1], [0], [0], [1], [0, 0, 1, 1], [], []>} : vector<8x128xf32>, vector<128x128xf32>, vector<8x128xf32> -> vector<8x128xf32>
    %7 = arith.addf %3, %6 : vector<8x128xf32>
    %c0_6 = arith.constant 0 : index
    %c0_7 = arith.constant 0 : index
    %8 = vector.load %arg7[%c0_6, %c0_7] : memref<8x128xf32, #tpu.memory_space<vmem>>, vector<8x128xf32>
    tpu.vector_store %arg7[%c0_6, %c0_7], %7 {strides = array<i32>} : memref<8x128xf32, #tpu.memory_space<vmem>>, vector<8x128xf32>,
    %c0_i32_8 = arith.constant 0 : i32
    %9 = arith.cmpi eq, %arg2, %c0_i32_8 : i32
    %10 = arith.extui %9 : i1 to i32
    %c0_i32_9 = arith.constant 0 : i32
    %11 = arith.cmpi ne, %10, %c0_i32_9 : i32
    scf.if %11 {
      %c0_10 = arith.constant 0 : index
      %c0_11 = arith.constant 0 : index
      %12 = vector.load %arg7[%c0_10, %c0_11] : memref<8x128xf32, #tpu.memory_space<vmem>>, vector<8x128xf32>
      %c0_12 = arith.constant 0 : index
      %c0_13 = arith.constant 0 : index
      %13 = vector.load %arg5[%c0_12, %c0_13] : memref<1x128xf32, #tpu.memory_space<vmem>>, vector<1x128xf32>
      %14 = vector.broadcast %13 : vector<1x128xf32> to vector<8x128xf32>
      %15 = arith.addf %12, %14 : vector<8x128xf32>
      %c0_14 = arith.constant 0 : index
      %c0_15 = arith.constant 0 : index
      %16 = vector.load %arg6[%c0_14, %c0_15] : memref<8x128xf32, #tpu.memory_space<vmem>>, vector<8x128xf32>
      tpu.vector_store %arg6[%c0_14, %c0_15], %15 {strides = array<i32>} : memref<8x128xf32, #tpu.memory_space<vmem>>, vector<8x128xf32>,
    } else {
    }
    return
  }
  func.func @transform_0(%arg0: i32, %arg1: i32, %arg2: i32) -> (i32, i32) {
    %c0_i32 = arith.constant 0 : i32
    return %arg0, %arg2 : i32, i32
  }
  func.func @transform_1(%arg0: i32, %arg1: i32, %arg2: i32) -> (i32, i32) {
    %c0_i32 = arith.constant 0 : i32
    return %arg2, %arg1 : i32, i32
  }
  func.func @transform_2(%arg0: i32, %arg1: i32, %arg2: i32) -> (i32, i32) {
    %c0_i32 = arith.constant 0 : i32
    %c0_i32_0 = arith.constant 0 : i32
    return %c0_i32, %arg1 : i32, i32
  }
  func.func @transform_3(%arg0: i32, %arg1: i32, %arg2: i32) -> (i32, i32) {
    %c0_i32 = arith.constant 0 : i32
    return %arg0, %arg1 : i32, i32
  }
}

</mosaic_0001>

<llo_original>
// kernel: fc_block_forward.1
$region0: #{fc_block_forward.1}
  #allocation0 [shape = 'u32[]', space=smem, size = 0x4, offset = 0x4, fixed_abs, tag = 'smem constant byte address 0x4 - core index']
  #allocation1 [shape = 'u32[144,128]{1,0:T(1,128)}', space=vmem, size = 0x12000, scoped, tag = 'internal scratch']
  #allocation2 [shape = 'f32[8,128]{1,0:T(8,128)}', space=vmem, size = 0x1000, scoped, tag = 'scratch operand']
  %s0 = inlined_call_operand.vmem [shape: f32[8,128], index: 0, kind: input, shape index: {}]
  %s1 = inlined_call_operand.hbm [shape: f32[128,128], index: 1, kind: input, shape index: {}]
  %s2 = inlined_call_operand.vmem [shape: f32[1,128], index: 2, kind: input, shape index: {}]
  %s3 = inlined_call_operand.hbm [shape: f32[8,128], index: 3, kind: output, shape index: {}]
  %s4 = sld [smem:[#allocation0]]
  $region34: #{fc_block_forward.1} parent=0
    _
  %s6 = ssub.s32 1, %s4
  %s7 = scalar_select 0, %s6, %s4
  $region1: #{fc_block_forward.1} parent=0
    #allocation3 [shape = 'u8[65536]{0}', space=vmem, size = 0x10000, scoped, tag = 'input window, operand 1, single buffered']
    #allocation4 [shape = 's32[1]{0}', space=sflag, size = 0x4, scoped, tag = 'scoped memory for fc_block_forward.1']
    #allocation5 [shape = 's32[1]{0}', space=sflag, size = 0x4, scoped, tag = 'scoped memory for fc_block_forward.1']
    #allocation6 [shape = 'u8[4096]{0}', space=vmem, size = 0x1000, scoped, tag = 'output window, operand 0, single buffered']
    %8 = vsyncpa [#allocation4], 0
    %9 = vsyncpa [#allocation5], 0
    // Predicated region
    $region2: #{fc_block_forward.1} parent=1 // pred_check
      _
    $region3: #{fc_block_forward.1} parent=1 // pred_check_branch
      %11 = sbr.rel (0) target = $region5
    $region4: #{fc_block_forward.1} parent=1 // pred_region
      _
    $region5: #{fc_block_forward.1} parent=1 // pred_fallthru
      _
    // Predicated region
    $region6: #{fc_block_forward.1} parent=1 // pred_check
      _
    $region7: #{fc_block_forward.1} parent=1 // pred_check_branch
      %13 = sbr.rel (0) target = $region9
    $region8: #{fc_block_forward.1} parent=1 // pred_region
      %s15 = ssub.s32 2048, 2048
      %16 = vsyncadd [#allocation4], %s15
      %s17 = sshll.u32 [#allocation3], 4
      %s18 = int_to_ptr.vmem [resolvable:$true] %s17
      %23 = dma.hbm_to_vmem [thread:$0]  %s1, 2048, %s18, [#allocation4], 128, 128, 8
    $region9: #{fc_block_forward.1} parent=1 // pred_fallthru
      _
    // Predicated region
    $region10: #{fc_block_forward.1} parent=1 // pred_check
      _
    $region11: #{fc_block_forward.1} parent=1 // pred_check_branch
      %25 = sbr.rel (0) target = $region13
    $region12: #{fc_block_forward.1} parent=1 // pred_region
      _
    $region13: #{fc_block_forward.1} parent=1 // pred_fallthru
      _
    // Predicated region
    $region14: #{fc_block_forward.1} parent=1 // pred_check
      _
    $region15: #{fc_block_forward.1} parent=1 // pred_check_branch
      %27 = sbr.rel (0) target = $region17
    $region16: #{fc_block_forward.1} parent=1 // pred_region
      %28 = dma.done [#allocation4], 2048
    $region17: #{fc_block_forward.1} parent=1 // pred_fallthru
      _
    %p29 = scmp.eq.s32.totalorder 0, 0
    // Predicated region
    $region18: #{fc_block_forward.1} parent=1 // pred_check
      %p30 = pneg %p29
    $region19: #{fc_block_forward.1} parent=1 // pred_check_branch
      %32 = sbr.rel (%p30) target = $region21
    $region20: #{fc_block_forward.1} parent=1 // pred_region
      %33 = vst [vmem:[#allocation2] sm:$0xff] 0.0
    $region21: #{fc_block_forward.1} parent=1 // pred_fallthru
      _
    %v34 = vld [vmem:[#allocation2] sm:$0xff]
    %v35 = vld [vmem:[%s0] sm:$0xff]
    %v36 = vld [vmem:[#allocation3] sm:$0xff]
    %v37 = vld [vmem:[#allocation3 + $0x8] sm:$0xff]
    %v38 = vld [vmem:[#allocation3 + $0x10] sm:$0xff]
    %v39 = vld [vmem:[#allocation3 + $0x18] sm:$0xff]
    %v40 = vld [vmem:[#allocation3 + $0x20] sm:$0xff]
    %v41 = vld [vmem:[#allocation3 + $0x28] sm:$0xff]
    %v42 = vld [vmem:[#allocation3 + $0x30] sm:$0xff]
    %v43 = vld [vmem:[#allocation3 + $0x38] sm:$0xff]
    %v44 = vld [vmem:[#allocation3 + $0x40] sm:$0xff]
    %v45 = vld [vmem:[#allocation3 + $0x48] sm:$0xff]
    %v46 = vld [vmem:[#allocation3 + $0x50] sm:$0xff]
    %v47 = vld [vmem:[#allocation3 + $0x58] sm:$0xff]
    %v48 = vld [vmem:[#allocation3 + $0x60] sm:$0xff]
    %v49 = vld [vmem:[#allocation3 + $0x68] sm:$0xff]
    %v50 = vld [vmem:[#allocation3 + $0x70] sm:$0xff]
    %v51 = vld [vmem:[#allocation3 + $0x78] sm:$0xff]
    %52 = vmatprep.subr.mxu0 0.0
    %53 = vmatpush1.msra.mxu0 %v36
    %54 = vmatprep.subr.mxu0 0.0
    %55 = vmatpush1.msra.mxu0 %v37
    %56 = vmatprep.subr.mxu0 0.0
    %57 = vmatpush1.msra.mxu0 %v38
    %58 = vmatprep.subr.mxu0 0.0
    %59 = vmatpush1.msra.mxu0 %v39
    %60 = vmatprep.subr.mxu0 0.0
    %61 = vmatpush1.msra.mxu0 %v40
    %62 = vmatprep.subr.mxu0 0.0
    %63 = vmatpush1.msra.mxu0 %v41
    %64 = vmatprep.subr.mxu0 0.0
    %65 = vmatpush1.msra.mxu0 %v42
    %66 = vmatprep.subr.mxu0 0.0
    %67 = vmatpush1.msra.mxu0 %v43
    %68 = vmatprep.subr.mxu0 0.0
    %69 = vmatpush1.msra.mxu0 %v44
    %70 = vmatprep.subr.mxu0 0.0
    %71 = vmatpush1.msra.mxu0 %v45
    %72 = vmatprep.subr.mxu0 0.0
    %73 = vmatpush1.msra.mxu0 %v46
    %74 = vmatprep.subr.mxu0 0.0
    %75 = vmatpush1.msra.mxu0 %v47
    %76 = vmatprep.subr.mxu0 0.0
    %77 = vmatpush1.msra.mxu0 %v48
    %78 = vmatprep.subr.mxu0 0.0
    %79 = vmatpush1.msra.mxu0 %v49
    %80 = vmatprep.subr.mxu0 0.0
    %81 = vmatpush1.msra.mxu0 %v50
    %82 = vmatprep.subr.mxu0 0.0
    %83 = vmatpush1.msra.mxu0 %v51
    %84 = vmatprep.subr.mxu0 0.0
    %85 = vmatpush1.msra.mxu0 0.0
    %86 = vmatprep.subr.mxu0 0.0
    %87 = vmatpush1.msra.mxu0 0.0
    %88 = vmatprep.subr.mxu0 0.0
    %89 = vmatpush1.msra.mxu0 0.0
    %90 = vmatprep.subr.mxu0 0.0
    %91 = vmatpush1.msra.mxu0 0.0
    %92 = vmatprep.subr.mxu0 0.0
    %93 = vmatpush1.msra.mxu0 0.0
    %94 = vmatprep.subr.mxu0 0.0
    %95 = vmatpush1.msra.mxu0 0.0
    %96 = vmatprep.subr.mxu0 0.0
    %97 = vmatpush1.msra.mxu0 0.0
    %98 = vmatprep.subr.mxu0 0.0
    %99 = vmatpush1.msra.mxu0 0.0
    %100 = vmatprep.subr.mxu0 0.0
    %101 = vmatpush1.msra.mxu0 0.0
    %102 = vmatprep.subr.mxu0 0.0
    %103 = vmatpush1.msra.mxu0 0.0
    %104 = vmatprep.subr.mxu0 0.0
    %105 = vmatpush1.msra.mxu0 0.0
    %106 = vmatprep.subr.mxu0 0.0
    %107 = vmatpush1.msra.mxu0 0.0
    %108 = vmatprep.subr.mxu0 0.0
    %109 = vmatpush1.msra.mxu0 0.0
    %110 = vmatprep.subr.mxu0 0.0
    %111 = vmatpush1.msra.mxu0 0.0
    %112 = vmatprep.subr.mxu0 0.0
    %113 = vmatpush1.msra.mxu0 0.0
    %114 = vmatprep.subr.mxu0 0.0
    %115 = vmatpush1.msra.mxu0 0.0
    %116 = vmatprep.mubr.f32.mxu0 0.0
    %117 = vmatmul.mubr.f32.gmra.mrb[0].mxu0 %v35
    %v118 = vpop.f32.mrb[0].mxu0
    %v119 = vadd.f32 0.0, %v118
    %v120 = vpop.f32.mrb[0].mxu0
    %121 = vdwg.mxu0
    %v122 = vadd.f32 %v34, %v119
    %123 = vst [vmem:[#allocation2] sm:$0xff] %v122
    // Predicated region
    $region22: #{fc_block_forward.1} parent=1 // pred_check
      %p124 = pneg %p29
    $region23: #{fc_block_forward.1} parent=1 // pred_check_branch
      %126 = sbr.rel (%p124) target = $region25
    $region24: #{fc_block_forward.1} parent=1 // pred_region
      %v127 = vld [vmem:[#allocation2] sm:$0xff]
      %v128 = vld [vmem:[%s2] sm:$0x1]
      %v130 = vlaneseq
      %v131 = vshrl.u32 %v130, 7
      %v132 = vsub.s32 0, %v131
      %v133 = vrot.slane %v128, %v132
      %v135 = vadd.f32 %v127, %v133
      %136 = vst [vmem:[#allocation6] sm:$0xff] %v135
    $region25: #{fc_block_forward.1} parent=1 // pred_fallthru
      _
    // Predicated region
    $region26: #{fc_block_forward.1} parent=1 // pred_check
      _
    $region27: #{fc_block_forward.1} parent=1 // pred_check_branch
      %138 = sbr.rel (0) target = $region29
    $region28: #{fc_block_forward.1} parent=1 // pred_region
      %s140 = ssub.s32 128, 128
      %141 = vsyncadd [#allocation5], %s140
      %s143 = sshll.u32 [#allocation6], 4
      %s144 = int_to_ptr.vmem [resolvable:$true] %s143
      %146 = dma.vmem_to_hbm [thread:$0]  %s144, 128, %s3, [#allocation5]
    $region29: #{fc_block_forward.1} parent=1 // pred_fallthru
      _
    // Predicated region
    $region30: #{fc_block_forward.1} parent=1 // pred_check
      _
    $region31: #{fc_block_forward.1} parent=1 // pred_check_branch
      %148 = sbr.rel (0) target = $region33
    $region32: #{fc_block_forward.1} parent=1 // pred_region
      %149 = dma.done [#allocation5], 128
    $region33: #{fc_block_forward.1} parent=1 // pred_fallthru
      _
    %150 = vsyncpa [#allocation4], 1
    %151 = vsyncpa [#allocation5], 1

</llo_original>
